<compile_context>
chip_gen: v6e
topology: v6e:2x2x1
jax: 0.10.0
libtpu: 0.0.40
codegen_flags: <defaults>
</compile_context>

<pallas_src>
import jax
import jax.numpy as jnp
from jax.experimental import pallas as pl
from jax.experimental.pallas import tpu as pltpu


_TARGET_TILE_BYTES = 8 * 1024 * 1024   # ~8 MiB per tile (perf review: 6-8 MiB)
_VMEM_LIMIT_BYTES = 48 * 1024 * 1024   # covers 4 x tile (double-buffered in+out) + headroom


def _rescale_kernel(x_ref, w_ref, o_ref):
    # x_ref/o_ref: (br, bl) VMEM tile of the 2-D slab.
    # w_ref: (br, 1) per-row weight column OR (1, bl) per-lane weight row;
    # jnp broadcasting handles both — one VPU multiply per vreg either way.
    o_ref[...] = x_ref[...] * w_ref[...]


def _round_up(v: int, m: int) -> int:
    return ((v + m - 1) // m) * m


def _choose_tiles(R: int, L: int, itemsize: int):
    """Pick (row_block, lane_block) for an (R, L) slab."""
    # Packed-sublane granularity: 8 rows for 32-bit, 16 for bf16, 32 for int8/fp8.
    sub = max(8, 32 // itemsize)

    # Lane block: full row whenever a `sub`-row stripe fits the budget (single
    # contiguous DMA burst per buffer). Only split very long rows, and then with
    # a large 128-multiple block (ragged edge block is masked, never VMEM-blowing).
    if sub * L * itemsize <= _TARGET_TILE_BYTES:
        bl = L
    else:
        bl = max(128, (_TARGET_TILE_BYTES // (sub * itemsize)) // 128 * 128)
        bl = min(bl, _round_up(L, 128))

    # Row block: as many sublane-multiple rows as fit the per-tile budget.
    rows_budget = max(sub, (_TARGET_TILE_BYTES // max(1, bl * itemsize)) // sub * sub)
    if R <= sub or rows_budget >= R:
        br = R  # full extent is always a legal block shape
    else:
        br = rows_budget  # multiple of `sub` (hence of 8) and < R

    # Megacore (v7x: 2 TensorCores): prefer >= 2 (and even) steps on the leading
    # "parallel" row axis so both cores stream.  Measured-neutral on v5e/v6e.
    if R >= 2 * sub:
        n = pl.cdiv(R, br)
        if n < 2:
            br = _round_up(pl.cdiv(R, 2), sub)
        elif n % 2 == 1:
            cand = _round_up(pl.cdiv(R, n + 1), sub)
            if sub <= cand < R and pl.cdiv(R, cand) % 2 == 0:
                br = cand
    return br, bl


def rescale(x: jax.Array, weight: jax.Array) -> jax.Array:
    """x: (N, C, H, W); weight: (C,). Returns weight[c] * x[n, c, :, :]."""
    N, C, H, W = x.shape
    assert weight.shape == (C,)
    L = H * W
    itemsize = jnp.dtype(x.dtype).itemsize

    # NOTE: weight is rounded once to x.dtype so the multiply/store stay in the
    # input dtype. (PyTorch with an f32 weight would promote then round at the
    # end; the fidelity delta of a per-channel scale is negligible.)
    w = weight.astype(x.dtype)

    if L < 128:
        # Small-spatial fast path: fold C into the lane axis so every store is a
        # full-width vst instead of a <128-lane masked vst.msk.  Weight becomes
        # a (1, C*L) lane row (each channel's scale repeated L times); it is tiny
        # so refetching it per row-tile adds negligible HBM traffic.
        R, Lf = N, C * L
        x2 = x.reshape(R, Lf)
        w2 = jnp.repeat(w, L).reshape(1, Lf)
        br, bl = _choose_tiles(R, Lf, itemsize)
        w_spec = pl.BlockSpec((1, bl), lambda i, j: (0, j))
    else:
        # Main path: lane-dense (N*C, H*W) slab + tiny (N*C, 1) weight column.
        # Rows stay the OUTER grid axis so the weight block index is unchanged
        # across inner lane steps (no re-DMA of the weight).
        R, Lf = N * C, L
        x2 = x.reshape(R, Lf)
        w2 = jnp.broadcast_to(w[None, :], (N, C)).reshape(R, 1)
        br, bl = _choose_tiles(R, Lf, itemsize)
        w_spec = pl.BlockSpec((br, 1), lambda i, j: (i, 0))

    grid = (pl.cdiv(R, br), pl.cdiv(Lf, bl))

    # TODO(synk): sweep pipeline_mode=pl.Buffered(3) on v7x (3 buffers at 8 MiB
    # tiles would sit near the 64 MiB physical VMEM cap, so left at default 2).
    out2 = pl.pallas_call(
        _rescale_kernel,
        out_shape=jax.ShapeDtypeStruct((R, Lf), x.dtype),
        grid=grid,
        in_specs=[
            pl.BlockSpec((br, bl), lambda i, j: (i, j)),
            w_spec,
        ],
        out_specs=pl.BlockSpec((br, bl), lambda i, j: (i, j)),
        compiler_params=pltpu.CompilerParams(
            dimension_semantics=("parallel", "parallel"),
            vmem_limit_bytes=_VMEM_LIMIT_BYTES,
        ),
    )(x2, w2)

    return out2.reshape(N, C, H, W)


if __name__ == "__main__":
    # Small deterministic example consistent with the module's forward:
    # batch=2, channels=4, spatial=16x16.
    N, C, H, W = 2, 4, 16, 16

    key = jax.random.PRNGKey(0)
    kx, kw = jax.random.split(key)
    x = jax.random.normal(kx, (N, C, H, W), dtype=jnp.float32)

    # PyTorch __init__ uses torch.ones(num_channels, 1, 1); perturb it
    # deterministically so the per-channel scaling is actually exercised.
    weight = jnp.ones((C,), dtype=jnp.float32) + 0.1 * jax.random.normal(
        kw, (C,), dtype=jnp.float32
    )

    out = rescale(x, weight)
    out = jax.block_until_ready(out)

    # Reference check (plain JAX broadcast, mirrors weight.view(C,1,1) * x).
    ref = weight[None, :, None, None] * x
    assert out.shape == x.shape and out.dtype == x.dtype
    assert jnp.allclose(out, ref, atol=1e-6, rtol=1e-6)

    print("KERNEL_OK")
</pallas_src>

<mosaic_0001>
module attributes {stable_mosaic.version = 11 : i64} {
  func.func @_rescale_kernel(%arg0: i32, %arg1: i32, %arg2: memref<8x256xf32, #tpu.memory_space<vmem>>, %arg3: memref<8x1xf32, #tpu.memory_space<vmem>>, %arg4: memref<8x256xf32, #tpu.memory_space<vmem>>) attributes {dimension_semantics = [#tpu.dimension_semantics<parallel>, #tpu.dimension_semantics<parallel>], iteration_bounds = array<i64: 1, 1>, scalar_prefetch = 0 : i64, scratch_operands = 0 : i64, tpu.core_type = #tpu.core_type<tc>, window_params = [{transform_indices = @transform_0, window_bounds = array<i64: 8, 256>}, {transform_indices = @transform_1, window_bounds = array<i64: 8, 1>}, {transform_indices = @transform_2, window_bounds = array<i64: 8, 256>}]} {
    %c0 = arith.constant 0 : index
    %c0_0 = arith.constant 0 : index
    %0 = vector.load %arg2[%c0, %c0_0] : memref<8x256xf32, #tpu.memory_space<vmem>>, vector<8x256xf32>
    %c0_1 = arith.constant 0 : index
    %c0_2 = arith.constant 0 : index
    %1 = vector.load %arg3[%c0_1, %c0_2] : memref<8x1xf32, #tpu.memory_space<vmem>>, vector<8x1xf32>
    %2 = vector.broadcast %1 : vector<8x1xf32> to vector<8x256xf32>
    %3 = arith.mulf %0, %2 : vector<8x256xf32>
    %c0_3 = arith.constant 0 : index
    %c0_4 = arith.constant 0 : index
    %4 = vector.load %arg4[%c0_3, %c0_4] : memref<8x256xf32, #tpu.memory_space<vmem>>, vector<8x256xf32>
    tpu.vector_store %arg4[%c0_3, %c0_4], %3 {strides = array<i32>} : memref<8x256xf32, #tpu.memory_space<vmem>>, vector<8x256xf32>,
    return
  }
  func.func @transform_0(%arg0: i32, %arg1: i32) -> (i32, i32) {
    %c0_i32 = arith.constant 0 : i32
    return %arg0, %arg1 : i32, i32
  }
  func.func @transform_1(%arg0: i32, %arg1: i32) -> (i32, i32) {
    %c0_i32 = arith.constant 0 : i32
    %c0_i32_0 = arith.constant 0 : i32
    return %arg0, %c0_i32 : i32, i32
  }
  func.func @transform_2(%arg0: i32, %arg1: i32) -> (i32, i32) {
    %c0_i32 = arith.constant 0 : i32
    return %arg0, %arg1 : i32, i32
  }
}

</mosaic_0001>

<llo_original>
// kernel: tpu_custom_call.1
$region0: #{tpu_custom_call.1}
  #allocation0 [shape = 'u32[]', space=smem, size = 0x4, offset = 0x4, fixed_abs, tag = 'smem constant byte address 0x4 - core index']
  #allocation1 [shape = 'u32[144,128]{1,0:T(1,128)}', space=vmem, size = 0x12000, scoped, tag = 'internal scratch']
  %s0 = inlined_call_operand.hbm [shape: f32[8,256], index: 0, kind: input, shape index: {}]
  %s1 = inlined_call_operand.vmem [shape: f32[8,1], index: 1, kind: input, shape index: {}]
  %s2 = inlined_call_operand.hbm [shape: f32[8,256], index: 2, kind: output, shape index: {}]
  %s3 = sld [smem:[#allocation0]]
  $region22: #{tpu_custom_call.1} parent=0
    _
  %s5 = ssub.s32 1, %s3
  %s6 = scalar_select 0, %s5, %s3
  $region1: #{tpu_custom_call.1} parent=0
    #allocation2 [shape = 'u8[8192]{0}', space=vmem, size = 0x2000, scoped, tag = 'input window, operand 0, single buffered']
    #allocation3 [shape = 's32[1]{0}', space=sflag, size = 0x4, scoped, tag = 'scoped memory for tpu_custom_call.1']
    #allocation4 [shape = 's32[1]{0}', space=sflag, size = 0x4, scoped, tag = 'scoped memory for tpu_custom_call.1']
    #allocation5 [shape = 'u8[8192]{0}', space=vmem, size = 0x2000, scoped, tag = 'output window, operand 0, single buffered']
    %7 = vsyncpa [#allocation3], 0
    %8 = vsyncpa [#allocation4], 0
    // Predicated region
    $region2: #{tpu_custom_call.1} parent=1 // pred_check
      _
    $region3: #{tpu_custom_call.1} parent=1 // pred_check_branch
      %10 = sbr.rel (0) target = $region5
    $region4: #{tpu_custom_call.1} parent=1 // pred_region
      %s12 = ssub.s32 256, 256
      %13 = vsyncadd [#allocation3], %s12
      %s15 = sshll.u32 [#allocation2], 4
      %s16 = int_to_ptr.vmem [resolvable:$true] %s15
      %18 = dma.hbm_to_vmem [thread:$0]  %s0, 256, %s16, [#allocation3]
    $region5: #{tpu_custom_call.1} parent=1 // pred_fallthru
      _
    // Predicated region
    $region6: #{tpu_custom_call.1} parent=1 // pred_check
      _
    $region7: #{tpu_custom_call.1} parent=1 // pred_check_branch
      %20 = sbr.rel (0) target = $region9
    $region8: #{tpu_custom_call.1} parent=1 // pred_region
      _
    $region9: #{tpu_custom_call.1} parent=1 // pred_fallthru
      _
    // Predicated region
    $region10: #{tpu_custom_call.1} parent=1 // pred_check
      _
    $region11: #{tpu_custom_call.1} parent=1 // pred_check_branch
      %22 = sbr.rel (0) target = $region13
    $region12: #{tpu_custom_call.1} parent=1 // pred_region
      %23 = dma.done [#allocation3], 256
    $region13: #{tpu_custom_call.1} parent=1 // pred_fallthru
      _
    %v24 = vld [vmem:[#allocation2] sm:$0xff]
    %v25 = vld [vmem:[#allocation2 + $0x8] sm:$0xff]
    %v26 = vld [vmem:[%s1] sm:$0xff]
    %28 = vset.pattern.permute.xlu0 0
    %29 = vperm.xlu0 %28, %v26
    %v30 = vpop.permute.xlu0 %29
    %v32 = vmul.f32 %v24, %v30
    %v33 = vmul.f32 %v25, %v30
    %34 = vst [vmem:[#allocation5] sm:$0xff] %v32
    %35 = vst [vmem:[#allocation5 + $0x8] sm:$0xff] %v33
    // Predicated region
    $region14: #{tpu_custom_call.1} parent=1 // pred_check
      _
    $region15: #{tpu_custom_call.1} parent=1 // pred_check_branch
      %37 = sbr.rel (0) target = $region17
    $region16: #{tpu_custom_call.1} parent=1 // pred_region
      %s39 = ssub.s32 256, 256
      %40 = vsyncadd [#allocation4], %s39
      %s42 = sshll.u32 [#allocation5], 4
      %s43 = int_to_ptr.vmem [resolvable:$true] %s42
      %45 = dma.vmem_to_hbm [thread:$0]  %s43, 256, %s2, [#allocation4]
    $region17: #{tpu_custom_call.1} parent=1 // pred_fallthru
      _
    // Predicated region
    $region18: #{tpu_custom_call.1} parent=1 // pred_check
      _
    $region19: #{tpu_custom_call.1} parent=1 // pred_check_branch
      %47 = sbr.rel (0) target = $region21
    $region20: #{tpu_custom_call.1} parent=1 // pred_region
      %48 = dma.done [#allocation4], 256
    $region21: #{tpu_custom_call.1} parent=1 // pred_fallthru
      _
    %49 = vsyncpa [#allocation3], 1
    %50 = vsyncpa [#allocation4], 1

</llo_original>
